<compile_context>
chip_gen: v7x
topology: tpu7x:2x2x1
jax: 0.10.0
libtpu: 0.0.40
codegen_flags: <defaults>
</compile_context>

<pallas_src>
import functools

import jax
import jax.numpy as jnp
from jax.experimental import pallas as pl
from jax.experimental.pallas import tpu as pltpu

INPUT_DIM = 7
PAD_IN = 8                    # input feature dim padded to sublane granularity
HIDDEN = (512, 256, 128)
OUTPUT_DIM = 2
HEAD_DIM = OUTPUT_DIM + 1     # fused mu (2) + value (1)
HEAD_PAD = 128                # lane-dense head output width


def _round_up(n, m):
    return ((n + m - 1) // m) * m


def _actor_critic_kernel(
    x_ref,
    w1_ref, b1_ref,
    w2_ref, b2_ref,
    w3_ref, b3_ref,
    wh_ref, bh_ref,
    head_ref,
):
    # bf16 MXU operands, f32 accumulation; ReLU / bias adds stay f32.
    x = x_ref[...].astype(jnp.bfloat16)

    h = jnp.dot(x, w1_ref[...], preferred_element_type=jnp.float32) + b1_ref[...]
    h = jnp.maximum(h, 0.0)
    h = jnp.dot(h.astype(jnp.bfloat16), w2_ref[...],
                preferred_element_type=jnp.float32) + b2_ref[...]
    h = jnp.maximum(h, 0.0)
    h = jnp.dot(h.astype(jnp.bfloat16), w3_ref[...],
                preferred_element_type=jnp.float32) + b3_ref[...]
    h = jnp.maximum(h, 0.0)

    # Fused, lane-dense head: [bb, 128] = [mu0, mu1, value, 0 ... 0].
    head_ref[...] = (
        jnp.dot(h.astype(jnp.bfloat16), wh_ref[...],
                preferred_element_type=jnp.float32) + bh_ref[...]
    )


@functools.partial(jax.jit, static_argnames=("block_b",))
def actor_critic_forward(x, params, block_b=1024):
    """Fused ActorCritic forward pass.

    x: [B, 7] float32 (any B >= 1; padded internally to the batch tile).
    params: dict of weights (see init_params).
    Returns (mu [B, 2], sigma [2], value [B, 1]).
    """
    B = x.shape[0]

    # --- batch tiling ------------------------------------------------------
    B8 = _round_up(B, 8)
    if B8 > 8:
        # Keep >= 2 grid steps so the "parallel" batch axis can shard across
        # both v7x TensorCores; on single-TC v5e/v6e this costs one cheap step.
        bb = min(block_b, _round_up((B8 + 1) // 2, 8))
    else:
        bb = 8
    bb = max(8, (bb // 8) * 8)
    B_pad = _round_up(B, bb)
    grid = (B_pad // bb,)

    # --- input padding: batch up to B_pad, features 7 -> 8 ------------------
    x = jnp.pad(x, ((0, B_pad - B), (0, PAD_IN - INPUT_DIM)))

    # --- weights: pad / fuse, cast matmul operands to bf16 (once per call) --
    w1 = jnp.pad(params["w1"], ((0, PAD_IN - INPUT_DIM), (0, 0))).astype(jnp.bfloat16)
    w2 = params["w2"].astype(jnp.bfloat16)
    w3 = params["w3"].astype(jnp.bfloat16)
    w_head = jnp.concatenate([params["wmu"], params["wv"]], axis=1)        # [128, 3]
    w_head = jnp.pad(w_head, ((0, 0), (0, HEAD_PAD - HEAD_DIM))).astype(jnp.bfloat16)
    b_head = jnp.concatenate([params["bmu"], params["bv"]], axis=1)        # [1, 3]
    b_head = jnp.pad(b_head, ((0, 0), (0, HEAD_PAD - HEAD_DIM)))           # f32

    # Weights / biases: full-array blocks, same block at every grid step.
    # TODO(synk): pipeline_mode=pl.Buffered(1) on these constant-index specs
    # would halve their VMEM footprint; skipped for compile-compat, headroom
    # is not needed at these sizes.
    def bcast2(shape):
        return pl.BlockSpec(shape, lambda i: (0, 0))

    in_specs = [
        pl.BlockSpec((bb, PAD_IN), lambda i: (i, 0)),                # x (batch-tiled)
        bcast2((PAD_IN, HIDDEN[0])), bcast2((1, HIDDEN[0])),         # W1, b1
        bcast2((HIDDEN[0], HIDDEN[1])), bcast2((1, HIDDEN[1])),      # W2, b2
        bcast2((HIDDEN[1], HIDDEN[2])), bcast2((1, HIDDEN[2])),      # W3, b3
        bcast2((HIDDEN[2], HEAD_PAD)), bcast2((1, HEAD_PAD)),        # W_head, b_head
    ]
    out_specs = pl.BlockSpec((bb, HEAD_PAD), lambda i: (i, 0))
    out_shape = jax.ShapeDtypeStruct((B_pad, HEAD_PAD), jnp.float32)

    flops = 2 * B_pad * (
        PAD_IN * HIDDEN[0]
        + HIDDEN[0] * HIDDEN[1]
        + HIDDEN[1] * HIDDEN[2]
        + HIDDEN[2] * HEAD_PAD
    )
    weight_bytes = 2 * (
        PAD_IN * HIDDEN[0]
        + HIDDEN[0] * HIDDEN[1]
        + HIDDEN[1] * HIDDEN[2]
        + HIDDEN[2] * HEAD_PAD
    ) + 4 * (HIDDEN[0] + HIDDEN[1] + HIDDEN[2] + HEAD_PAD)
    bytes_accessed = 4 * (B_pad * PAD_IN + B_pad * HEAD_PAD) + weight_bytes

    # TODO(synk): for repeated tiny-batch rollout calls, keep weights resident
    # across calls (cross-pallas_call prefetch) or batch env steps upstream —
    # the small-B floor is launch + weight-DMA bound, not compute bound.
    head = pl.pallas_call(
        _actor_critic_kernel,
        out_shape=out_shape,
        grid_spec=pltpu.PrefetchScalarGridSpec(
            num_scalar_prefetch=0,
            grid=grid,
            in_specs=in_specs,
            out_specs=out_specs,
        ),
        compiler_params=pltpu.CompilerParams(
            dimension_semantics=("parallel",),
        ),
        cost_estimate=pl.CostEstimate(
            flops=flops, transcendentals=0, bytes_accessed=bytes_accessed
        ),
    )(
        x,
        w1, params["b1"],
        w2, params["b2"],
        w3, params["b3"],
        w_head, b_head,
    )

    mu = head[:B, :OUTPUT_DIM]
    value = head[:B, OUTPUT_DIM:OUTPUT_DIM + 1]
    # sigma is batch-independent: computed outside the kernel.
    sigma = jnp.exp(params["log_sigma"])
    return mu, sigma, value


def init_params(key):
    """Deterministic init mimicking torch.nn.Linear default (U(-1/sqrt(fan_in), +))."""
    dims = [(INPUT_DIM, HIDDEN[0]), (HIDDEN[0], HIDDEN[1]), (HIDDEN[1], HIDDEN[2])]
    params = {}
    keys = jax.random.split(key, 10)
    ki = 0

    def linear(fan_in, fan_out, kw, kb):
        bound = 1.0 / jnp.sqrt(float(fan_in))
        w = jax.random.uniform(kw, (fan_in, fan_out), jnp.float32, -bound, bound)
        b = jax.random.uniform(kb, (1, fan_out), jnp.float32, -bound, bound)
        return w, b

    for li, (fi, fo) in enumerate(dims, start=1):
        w, b = linear(fi, fo, keys[ki], keys[ki + 1])
        ki += 2
        params[f"w{li}"] = w
        params[f"b{li}"] = b

    params["wmu"], params["bmu"] = linear(HIDDEN[2], OUTPUT_DIM, keys[ki], keys[ki + 1])
    ki += 2
    params["wv"], params["bv"] = linear(HIDDEN[2], 1, keys[ki], keys[ki + 1])
    ki += 2
    # nn.Parameter(torch.zeros(output_dim))
    params["log_sigma"] = jnp.zeros((OUTPUT_DIM,), jnp.float32)
    return params


def _reference_forward(x, p):
    h = jnp.maximum(x @ p["w1"] + p["b1"], 0.0)
    h = jnp.maximum(h @ p["w2"] + p["b2"], 0.0)
    h = jnp.maximum(h @ p["w3"] + p["b3"], 0.0)
    mu = h @ p["wmu"] + p["bmu"]
    value = h @ p["wv"] + p["bv"]
    sigma = jnp.exp(p["log_sigma"])
    return mu, sigma, value


if __name__ == "__main__":
    key = jax.random.PRNGKey(0)
    kp, kx = jax.random.split(key)
    params = init_params(kp)

    # Small aligned batch (grid has 2 steps: v7x dual-TC path exercised).
    B = 16
    x = jax.random.normal(kx, (B, INPUT_DIM), jnp.float32)
    mu, sigma, value = actor_critic_forward(x, params)
    jax.block_until_ready((mu, sigma, value))

    mu_r, sigma_r, value_r = _reference_forward(x, params)
    assert mu.shape == (B, OUTPUT_DIM) and sigma.shape == (OUTPUT_DIM,) and value.shape == (B, 1)
    # bf16 matmul operands (f32 accumulation): relax tolerances vs f32 reference.
    assert jnp.allclose(mu, mu_r, atol=2e-2, rtol=2e-2)
    assert jnp.allclose(sigma, sigma_r, atol=1e-6)
    assert jnp.allclose(value, value_r, atol=2e-2, rtol=2e-2)

    # Ragged batch (exercises in-wrapper batch + feature padding).
    B2 = 13
    x2 = jax.random.normal(jax.random.PRNGKey(1), (B2, INPUT_DIM), jnp.float32)
    mu2, sigma2, value2 = actor_critic_forward(x2, params)
    jax.block_until_ready((mu2, sigma2, value2))
    mu2_r, _, value2_r = _reference_forward(x2, params)
    assert mu2.shape == (B2, OUTPUT_DIM) and value2.shape == (B2, 1)
    assert jnp.allclose(mu2, mu2_r, atol=2e-2, rtol=2e-2)
    assert jnp.allclose(value2, value2_r, atol=2e-2, rtol=2e-2)

    print("KERNEL_OK")
</pallas_src>

<mosaic_0001>
module attributes {stable_mosaic.version = 11 : i64} {
  func.func @_actor_critic_kernel(%arg0: i32, %arg1: memref<8x8xf32, #tpu.memory_space<vmem>>, %arg2: memref<8x512xbf16, #tpu.memory_space<vmem>>, %arg3: memref<1x512xf32, #tpu.memory_space<vmem>>, %arg4: memref<512x256xbf16, #tpu.memory_space<vmem>>, %arg5: memref<1x256xf32, #tpu.memory_space<vmem>>, %arg6: memref<256x128xbf16, #tpu.memory_space<vmem>>, %arg7: memref<1x128xf32, #tpu.memory_space<vmem>>, %arg8: memref<128x128xbf16, #tpu.memory_space<vmem>>, %arg9: memref<1x128xf32, #tpu.memory_space<vmem>>, %arg10: memref<8x128xf32, #tpu.memory_space<vmem>>) attributes {dimension_semantics = [#tpu.dimension_semantics<parallel>], iteration_bounds = array<i64: 2>, scalar_prefetch = 0 : i64, scratch_operands = 0 : i64, tpu.core_type = #tpu.core_type<tc>, window_params = [{transform_indices = @transform_0, window_bounds = array<i64: 8, 8>}, {pipeline_mode = #tpu.pipeline_mode<synchronous>, transform_indices = @transform_1, window_bounds = array<i64: 8, 512>}, {pipeline_mode = #tpu.pipeline_mode<synchronous>, transform_indices = @transform_2, window_bounds = array<i64: 1, 512>}, {pipeline_mode = #tpu.pipeline_mode<synchronous>, transform_indices = @transform_3, window_bounds = array<i64: 512, 256>}, {pipeline_mode = #tpu.pipeline_mode<synchronous>, transform_indices = @transform_4, window_bounds = array<i64: 1, 256>}, {pipeline_mode = #tpu.pipeline_mode<synchronous>, transform_indices = @transform_5, window_bounds = array<i64: 256, 128>}, {pipeline_mode = #tpu.pipeline_mode<synchronous>, transform_indices = @transform_6, window_bounds = array<i64: 1, 128>}, {pipeline_mode = #tpu.pipeline_mode<synchronous>, transform_indices = @transform_7, window_bounds = array<i64: 128, 128>}, {pipeline_mode = #tpu.pipeline_mode<synchronous>, transform_indices = @transform_8, window_bounds = array<i64: 1, 128>}, {transform_indices = @transform_9, window_bounds = array<i64: 8, 128>}]} {
    %c0 = arith.constant 0 : index
    %c0_0 = arith.constant 0 : index
    %0 = vector.load %arg1[%c0, %c0_0] : memref<8x8xf32, #tpu.memory_space<vmem>>, vector<8x8xf32>
    %1 = arith.truncf %0 : vector<8x8xf32> to vector<8x8xbf16>
    %c0_1 = arith.constant 0 : index
    %c0_2 = arith.constant 0 : index
    %2 = vector.load %arg2[%c0_1, %c0_2] : memref<8x512xbf16, #tpu.memory_space<vmem>>, vector<8x512xbf16>
    %cst = arith.constant dense<0.000000e+00> : vector<8x512xf32>
    %3 = tpu.matmul %1, %2, %cst {dimension_numbers = #tpu.dot_dimension_numbers<[1], [0], [0], [1], [0, 0, 1, 1], [], []>} : vector<8x8xbf16>, vector<8x512xbf16>, vector<8x512xf32> -> vector<8x512xf32>
    %c0_3 = arith.constant 0 : index
    %c0_4 = arith.constant 0 : index
    %4 = vector.load %arg3[%c0_3, %c0_4] : memref<1x512xf32, #tpu.memory_space<vmem>>, vector<1x512xf32>
    %5 = vector.broadcast %4 : vector<1x512xf32> to vector<8x512xf32>
    %6 = arith.addf %3, %5 : vector<8x512xf32>
    %cst_5 = arith.constant 0.000000e+00 : f32
    %7 = vector.broadcast %cst_5 : f32 to vector<8x512xf32>
    %8 = arith.maximumf %6, %7 : vector<8x512xf32>
    %9 = arith.truncf %8 : vector<8x512xf32> to vector<8x512xbf16>
    %c0_6 = arith.constant 0 : index
    %c0_7 = arith.constant 0 : index
    %10 = vector.load %arg4[%c0_6, %c0_7] : memref<512x256xbf16, #tpu.memory_space<vmem>>, vector<512x256xbf16>
    %cst_8 = arith.constant dense<0.000000e+00> : vector<8x256xf32>
    %11 = tpu.matmul %9, %10, %cst_8 {dimension_numbers = #tpu.dot_dimension_numbers<[1], [0], [0], [1], [0, 0, 1, 1], [], []>} : vector<8x512xbf16>, vector<512x256xbf16>, vector<8x256xf32> -> vector<8x256xf32>
    %c0_9 = arith.constant 0 : index
    %c0_10 = arith.constant 0 : index
    %12 = vector.load %arg5[%c0_9, %c0_10] : memref<1x256xf32, #tpu.memory_space<vmem>>, vector<1x256xf32>
    %13 = vector.broadcast %12 : vector<1x256xf32> to vector<8x256xf32>
    %14 = arith.addf %11, %13 : vector<8x256xf32>
    %cst_11 = arith.constant 0.000000e+00 : f32
    %15 = vector.broadcast %cst_11 : f32 to vector<8x256xf32>
    %16 = arith.maximumf %14, %15 : vector<8x256xf32>
    %17 = arith.truncf %16 : vector<8x256xf32> to vector<8x256xbf16>
    %c0_12 = arith.constant 0 : index
    %c0_13 = arith.constant 0 : index
    %18 = vector.load %arg6[%c0_12, %c0_13] : memref<256x128xbf16, #tpu.memory_space<vmem>>, vector<256x128xbf16>
    %cst_14 = arith.constant dense<0.000000e+00> : vector<8x128xf32>
    %19 = tpu.matmul %17, %18, %cst_14 {dimension_numbers = #tpu.dot_dimension_numbers<[1], [0], [0], [1], [0, 0, 1, 1], [], []>} : vector<8x256xbf16>, vector<256x128xbf16>, vector<8x128xf32> -> vector<8x128xf32>
    %c0_15 = arith.constant 0 : index
    %c0_16 = arith.constant 0 : index
    %20 = vector.load %arg7[%c0_15, %c0_16] : memref<1x128xf32, #tpu.memory_space<vmem>>, vector<1x128xf32>
    %21 = vector.broadcast %20 : vector<1x128xf32> to vector<8x128xf32>
    %22 = arith.addf %19, %21 : vector<8x128xf32>
    %cst_17 = arith.constant 0.000000e+00 : f32
    %23 = vector.broadcast %cst_17 : f32 to vector<8x128xf32>
    %24 = arith.maximumf %22, %23 : vector<8x128xf32>
    %25 = arith.truncf %24 : vector<8x128xf32> to vector<8x128xbf16>
    %c0_18 = arith.constant 0 : index
    %c0_19 = arith.constant 0 : index
    %26 = vector.load %arg8[%c0_18, %c0_19] : memref<128x128xbf16, #tpu.memory_space<vmem>>, vector<128x128xbf16>
    %cst_20 = arith.constant dense<0.000000e+00> : vector<8x128xf32>
    %27 = tpu.matmul %25, %26, %cst_20 {dimension_numbers = #tpu.dot_dimension_numbers<[1], [0], [0], [1], [0, 0, 1, 1], [], []>} : vector<8x128xbf16>, vector<128x128xbf16>, vector<8x128xf32> -> vector<8x128xf32>
    %c0_21 = arith.constant 0 : index
    %c0_22 = arith.constant 0 : index
    %28 = vector.load %arg9[%c0_21, %c0_22] : memref<1x128xf32, #tpu.memory_space<vmem>>, vector<1x128xf32>
    %29 = vector.broadcast %28 : vector<1x128xf32> to vector<8x128xf32>
    %30 = arith.addf %27, %29 : vector<8x128xf32>
    %c0_23 = arith.constant 0 : index
    %c0_24 = arith.constant 0 : index
    %31 = vector.load %arg10[%c0_23, %c0_24] : memref<8x128xf32, #tpu.memory_space<vmem>>, vector<8x128xf32>
    tpu.vector_store %arg10[%c0_23, %c0_24], %30 {strides = array<i32>} : memref<8x128xf32, #tpu.memory_space<vmem>>, vector<8x128xf32>,
    return
  }
  func.func @transform_0(%arg0: i32) -> (i32, i32) {
    %c0_i32 = arith.constant 0 : i32
    %c0_i32_0 = arith.constant 0 : i32
    return %arg0, %c0_i32 : i32, i32
  }
  func.func @transform_1(%arg0: i32) -> (i32, i32) {
    %c0_i32 = arith.constant 0 : i32
    %c0_i32_0 = arith.constant 0 : i32
    %c0_i32_1 = arith.constant 0 : i32
    return %c0_i32, %c0_i32_0 : i32, i32
  }
  func.func @transform_2(%arg0: i32) -> (i32, i32) {
    %c0_i32 = arith.constant 0 : i32
    %c0_i32_0 = arith.constant 0 : i32
    %c0_i32_1 = arith.constant 0 : i32
    return %c0_i32, %c0_i32_0 : i32, i32
  }
  func.func @transform_3(%arg0: i32) -> (i32, i32) {
    %c0_i32 = arith.constant 0 : i32
    %c0_i32_0 = arith.constant 0 : i32
    %c0_i32_1 = arith.constant 0 : i32
    return %c0_i32, %c0_i32_0 : i32, i32
  }
  func.func @transform_4(%arg0: i32) -> (i32, i32) {
    %c0_i32 = arith.constant 0 : i32
    %c0_i32_0 = arith.constant 0 : i32
    %c0_i32_1 = arith.constant 0 : i32
    return %c0_i32, %c0_i32_0 : i32, i32
  }
  func.func @transform_5(%arg0: i32) -> (i32, i32) {
    %c0_i32 = arith.constant 0 : i32
    %c0_i32_0 = arith.constant 0 : i32
    %c0_i32_1 = arith.constant 0 : i32
    return %c0_i32, %c0_i32_0 : i32, i32
  }
  func.func @transform_6(%arg0: i32) -> (i32, i32) {
    %c0_i32 = arith.constant 0 : i32
    %c0_i32_0 = arith.constant 0 : i32
    %c0_i32_1 = arith.constant 0 : i32
    return %c0_i32, %c0_i32_0 : i32, i32
  }
  func.func @transform_7(%arg0: i32) -> (i32, i32) {
    %c0_i32 = arith.constant 0 : i32
    %c0_i32_0 = arith.constant 0 : i32
    %c0_i32_1 = arith.constant 0 : i32
    return %c0_i32, %c0_i32_0 : i32, i32
  }
  func.func @transform_8(%arg0: i32) -> (i32, i32) {
    %c0_i32 = arith.constant 0 : i32
    %c0_i32_0 = arith.constant 0 : i32
    %c0_i32_1 = arith.constant 0 : i32
    return %c0_i32, %c0_i32_0 : i32, i32
  }
  func.func @transform_9(%arg0: i32) -> (i32, i32) {
    %c0_i32 = arith.constant 0 : i32
    %c0_i32_0 = arith.constant 0 : i32
    return %arg0, %c0_i32 : i32, i32
  }
}

</mosaic_0001>

<llo_original>
// kernel: actor_critic_forward.1
$region0: #{actor_critic_forward.1}
  #allocation0 [shape = 'u32[]', space=smem, size = 0x4, offset = 0x4, fixed_abs, tag = 'smem constant byte address 0x4 - core index']
  #allocation1 [shape = 'u32[144,128]{1,0:T(1,128)}', space=vmem, size = 0x12000, scoped, tag = 'internal scratch']
  %s0 = inlined_call_operand.vmem [shape: f32[16,8], index: 0, kind: input, shape index: {}]
  %s1 = inlined_call_operand.vmem [shape: bf16[8,512], index: 1, kind: input, shape index: {}]
  %s2 = inlined_call_operand.vmem [shape: f32[1,512], index: 2, kind: input, shape index: {}]
  %s3 = inlined_call_operand.vmem [shape: bf16[512,256], index: 3, kind: input, shape index: {}]
  %s4 = inlined_call_operand.vmem [shape: f32[1,256], index: 4, kind: input, shape index: {}]
  %s5 = inlined_call_operand.vmem [shape: bf16[256,128], index: 5, kind: input, shape index: {}]
  %s6 = inlined_call_operand.vmem [shape: f32[1,128], index: 6, kind: input, shape index: {}]
  %s7 = inlined_call_operand.vmem [shape: bf16[128,128], index: 7, kind: input, shape index: {}]
  %s8 = inlined_call_operand.vmem [shape: f32[1,128], index: 8, kind: input, shape index: {}]
  %s9 = inlined_call_operand.vmem [shape: f32[16,128], index: 9, kind: output, shape index: {}]
  %s10 = sld [smem:[#allocation0]]
  $region69: #{actor_critic_forward.1} parent=0
    _
  %s12 = ssub.s32 1, %s10
  %s13 = scalar_select 0, %s12, %s10
  loop: start=0, step=1, limit=4
  $region2: #{actor_critic_forward.1} parent=0 // loop_pre_header
    _
  $region3: #{actor_critic_forward.1} parent=0 // loop_header
    %s15 = sphi 0, %s19
    %p16 = scmp.ge.s32.totalorder %s15, 4
    %s25 = sphi 0, %s27
    %s28 = sphi 0, %s25
    %s29 = sphi 0, %s28
    %s45 = sphi 0, %s29
    %s49 = sphi 0, %s49
    %s51 = sphi 0, %s49
    %s52 = sphi 0, %s51
    %s66 = sphi 0, %s52
    %s70 = sphi 0, %s70
    %s72 = sphi 0, %s70
    %s73 = sphi 0, %s72
    %s87 = sphi 0, %s73
    %s91 = sphi 0, %s91
    %s93 = sphi 0, %s91
    %s94 = sphi 0, %s93
    %s108 = sphi 0, %s94
    %s112 = sphi 0, %s112
    %s114 = sphi 0, %s112
    %s115 = sphi 0, %s114
    %s129 = sphi 0, %s115
    %s133 = sphi 0, %s133
    %s135 = sphi 0, %s133
    %s136 = sphi 0, %s135
    %s150 = sphi 0, %s136
    %s154 = sphi 0, %s154
    %s156 = sphi 0, %s154
    %s157 = sphi 0, %s156
    %s171 = sphi 0, %s157
    %s175 = sphi 0, %s175
    %s177 = sphi 0, %s175
    %s178 = sphi 0, %s177
    %s192 = sphi 0, %s178
    %s196 = sphi 0, %s196
    %s198 = sphi 0, %s196
    %s199 = sphi 0, %s198
    %s213 = sphi 0, %s199
    %s219 = sphi 0, %s221
    %s222 = sphi 0, %s219
    %s223 = sphi 0, %s222
    %s239 = sphi 0, %s223
  $region4: #{actor_critic_forward.1} parent=0 // loop_header_branch
    %18 = sbr.rel (%p16) target = $region8
  $region5: #{actor_critic_forward.1} parent=0 // loop_body
    %s20 = ssub.s32 %s15, 1
    %s21 = ssub.s32 %s15, 2
    %s22 = sadd.s32 %s15, 1
    %s23 = ssub.s32 %s15, %s22
    %p24 = scmp.eq.s32.totalorder %s23, 0
    %s26 = sadd.s32 %s25, 1
    %s27 = scalar_select %p24, %s25, %s26
    %p30 = pneg %p24
    %p31 = scmp.eq.s32.totalorder %s15, 1
    %p32 = por %p30, %p31
    %p33 = scmp.ne.s32.totalorder %s25, %s28
    %p34 = scmp.eq.s32.totalorder %s15, 0
    %p35 = por %p33, %p34
    %p36 = scmp.ne.s32.totalorder %s25, %s28
    %p37 = scmp.eq.s32.totalorder %s20, 1
    %p38 = por %p36, %p37
    %p39 = scmp.ne.s32.totalorder %s28, %s29
    %p40 = scmp.eq.s32.totalorder %s20, 0
    %p41 = por %p39, %p40
    %p42 = scmp.ne.s32.totalorder %s28, %s29
    %p43 = scmp.eq.s32.totalorder %s21, 1
    %p44 = por %p42, %p43
    %p46 = scmp.ne.s32.totalorder %s29, %s45
    %p47 = scmp.eq.s32.totalorder %s21, 0
    %p48 = por %p46, %p47
    %s50 = sadd.s32 %s49, 1
    %p53 = scmp.eq.s32.totalorder %s15, 1
    %p54 = scmp.ne.s32.totalorder %s49, %s51
    %p55 = scmp.eq.s32.totalorder %s15, 0
    %p56 = por %p54, %p55
    %p57 = scmp.ne.s32.totalorder %s49, %s51
    %p58 = scmp.eq.s32.totalorder %s20, 1
    %p59 = por %p57, %p58
    %p60 = scmp.ne.s32.totalorder %s51, %s52
    %p61 = scmp.eq.s32.totalorder %s20, 0
    %p62 = por %p60, %p61
    %p63 = scmp.ne.s32.totalorder %s51, %s52
    %p64 = scmp.eq.s32.totalorder %s21, 1
    %p65 = por %p63, %p64
    %p67 = scmp.ne.s32.totalorder %s52, %s66
    %p68 = scmp.eq.s32.totalorder %s21, 0
    %p69 = por %p67, %p68
    %s71 = sadd.s32 %s70, 1
    %p74 = scmp.eq.s32.totalorder %s15, 1
    %p75 = scmp.ne.s32.totalorder %s70, %s72
    %p76 = scmp.eq.s32.totalorder %s15, 0
    %p77 = por %p75, %p76
    %p78 = scmp.ne.s32.totalorder %s70, %s72
    %p79 = scmp.eq.s32.totalorder %s20, 1
    %p80 = por %p78, %p79
    %p81 = scmp.ne.s32.totalorder %s72, %s73
    %p82 = scmp.eq.s32.totalorder %s20, 0
    %p83 = por %p81, %p82
    %p84 = scmp.ne.s32.totalorder %s72, %s73
    %p85 = scmp.eq.s32.totalorder %s21, 1
    %p86 = por %p84, %p85
    %p88 = scmp.ne.s32.totalorder %s73, %s87
    %p89 = scmp.eq.s32.totalorder %s21, 0
    %p90 = por %p88, %p89
    %s92 = sadd.s32 %s91, 1
    %p95 = scmp.eq.s32.totalorder %s15, 1
    %p96 = scmp.ne.s32.totalorder %s91, %s93
    %p97 = scmp.eq.s32.totalorder %s15, 0
    %p98 = por %p96, %p97
    %p99 = scmp.ne.s32.totalorder %s91, %s93
    %p100 = scmp.eq.s32.totalorder %s20, 1
    %p101 = por %p99, %p100
    %p102 = scmp.ne.s32.totalorder %s93, %s94
    %p103 = scmp.eq.s32.totalorder %s20, 0
    %p104 = por %p102, %p103
    %p105 = scmp.ne.s32.totalorder %s93, %s94
    %p106 = scmp.eq.s32.totalorder %s21, 1
    %p107 = por %p105, %p106
    %p109 = scmp.ne.s32.totalorder %s94, %s108
    %p110 = scmp.eq.s32.totalorder %s21, 0
    %p111 = por %p109, %p110
    %s113 = sadd.s32 %s112, 1
    %p116 = scmp.eq.s32.totalorder %s15, 1
    %p117 = scmp.ne.s32.totalorder %s112, %s114
    %p118 = scmp.eq.s32.totalorder %s15, 0
    %p119 = por %p117, %p118
    %p120 = scmp.ne.s32.totalorder %s112, %s114
    %p121 = scmp.eq.s32.totalorder %s20, 1
    %p122 = por %p120, %p121
    %p123 = scmp.ne.s32.totalorder %s114, %s115
    %p124 = scmp.eq.s32.totalorder %s20, 0
    %p125 = por %p123, %p124
    %p126 = scmp.ne.s32.totalorder %s114, %s115
    %p127 = scmp.eq.s32.totalorder %s21, 1
    %p128 = por %p126, %p127
    %p130 = scmp.ne.s32.totalorder %s115, %s129
    %p131 = scmp.eq.s32.totalorder %s21, 0
    %p132 = por %p130, %p131
    %s134 = sadd.s32 %s133, 1
    %p137 = scmp.eq.s32.totalorder %s15, 1
    %p138 = scmp.ne.s32.totalorder %s133, %s135
    %p139 = scmp.eq.s32.totalorder %s15, 0
    %p140 = por %p138, %p139
    %p141 = scmp.ne.s32.totalorder %s133, %s135
    %p142 = scmp.eq.s32.totalorder %s20, 1
    %p143 = por %p141, %p142
    %p144 = scmp.ne.s32.totalorder %s135, %s136
    %p145 = scmp.eq.s32.totalorder %s20, 0
    %p146 = por %p144, %p145
    %p147 = scmp.ne.s32.totalorder %s135, %s136
    %p148 = scmp.eq.s32.totalorder %s21, 1
    %p149 = por %p147, %p148
    %p151 = scmp.ne.s32.totalorder %s136, %s150
    %p152 = scmp.eq.s32.totalorder %s21, 0
    %p153 = por %p151, %p152
    %s155 = sadd.s32 %s154, 1
    %p158 = scmp.eq.s32.totalorder %s15, 1
    %p159 = scmp.ne.s32.totalorder %s154, %s156
    %p160 = scmp.eq.s32.totalorder %s15, 0
    %p161 = por %p159, %p160
    %p162 = scmp.ne.s32.totalorder %s154, %s156
    %p163 = scmp.eq.s32.totalorder %s20, 1
    %p164 = por %p162, %p163
    %p165 = scmp.ne.s32.totalorder %s156, %s157
    %p166 = scmp.eq.s32.totalorder %s20, 0
    %p167 = por %p165, %p166
    %p168 = scmp.ne.s32.totalorder %s156, %s157
    %p169 = scmp.eq.s32.totalorder %s21, 1
    %p170 = por %p168, %p169
    %p172 = scmp.ne.s32.totalorder %s157, %s171
    %p173 = scmp.eq.s32.totalorder %s21, 0
    %p174 = por %p172, %p173
    %s176 = sadd.s32 %s175, 1
    %p179 = scmp.eq.s32.totalorder %s15, 1
    %p180 = scmp.ne.s32.totalorder %s175, %s177
    %p181 = scmp.eq.s32.totalorder %s15, 0
    %p182 = por %p180, %p181
    %p183 = scmp.ne.s32.totalorder %s175, %s177
    %p184 = scmp.eq.s32.totalorder %s20, 1
    %p185 = por %p183, %p184
    %p186 = scmp.ne.s32.totalorder %s177, %s178
    %p187 = scmp.eq.s32.totalorder %s20, 0
    %p188 = por %p186, %p187
    %p189 = scmp.ne.s32.totalorder %s177, %s178
    %p190 = scmp.eq.s32.totalorder %s21, 1
    %p191 = por %p189, %p190
    %p193 = scmp.ne.s32.totalorder %s178, %s192
    %p194 = scmp.eq.s32.totalorder %s21, 0
    %p195 = por %p193, %p194
    %s197 = sadd.s32 %s196, 1
    %p200 = scmp.eq.s32.totalorder %s15, 1
    %p201 = scmp.ne.s32.totalorder %s196, %s198
    %p202 = scmp.eq.s32.totalorder %s15, 0
    %p203 = por %p201, %p202
    %p204 = scmp.ne.s32.totalorder %s196, %s198
    %p205 = scmp.eq.s32.totalorder %s20, 1
    %p206 = por %p204, %p205
    %p207 = scmp.ne.s32.totalorder %s198, %s199
    %p208 = scmp.eq.s32.totalorder %s20, 0
    %p209 = por %p207, %p208
    %p210 = scmp.ne.s32.totalorder %s198, %s199
    %p211 = scmp.eq.s32.totalorder %s21, 1
    %p212 = por %p210, %p211
    %p214 = scmp.ne.s32.totalorder %s199, %s213
    %p215 = scmp.eq.s32.totalorder %s21, 0
    %p216 = por %p214, %p215
    %s217 = ssub.s32 %s15, %s22
    %p218 = scmp.eq.s32.totalorder %s217, 0
    %s220 = sadd.s32 %s219, 1
    %s221 = scalar_select %p218, %s219, %s220
    %p224 = pneg %p218
    %p225 = scmp.eq.s32.totalorder %s15, 1
    %p226 = por %p224, %p225
    %p227 = scmp.ne.s32.totalorder %s219, %s222
    %p228 = scmp.eq.s32.totalorder %s15, 0
    %p229 = por %p227, %p228
    %p230 = scmp.ne.s32.totalorder %s219, %s222
    %p231 = scmp.eq.s32.totalorder %s20, 1
    %p232 = por %p230, %p231
    %p233 = scmp.ne.s32.totalorder %s222, %s223
    %p234 = scmp.eq.s32.totalorder %s20, 0
    %p235 = por %p233, %p234
    %p236 = scmp.ne.s32.totalorder %s222, %s223
    %p237 = scmp.eq.s32.totalorder %s21, 1
    %p238 = por %p236, %p237
    %p240 = scmp.ne.s32.totalorder %s223, %s239
    %p241 = scmp.eq.s32.totalorder %s21, 0
    %p242 = por %p240, %p241
    %p243 = scmp.le.s32.totalorder 1, %s15
    %p244 = scmp.lt.s32.totalorder %s15, 3
    %p245 = pnand %p243, %p244
    %p246 = pneg %p245
    // Predicated region
    $region9: #{actor_critic_forward.1} parent=5 // pred_check
      _
    $region10: #{actor_critic_forward.1} parent=5 // pred_check_branch
      %248 = sbr.rel (%p245) target = $region12
    $region11: #{actor_critic_forward.1} parent=5 // pred_region
      %s249 = ssub.s32 %s15, 1
      // Predicated region
      $region13: #{actor_critic_forward.1} parent=11 // pred_check
        %p250 = pneg %p62
      $region14: #{actor_critic_forward.1} parent=11 // pred_check_branch
        %252 = sbr.rel (%p250) target = $region16
      $region15: #{actor_critic_forward.1} parent=11 // pred_region
        _
      $region16: #{actor_critic_forward.1} parent=11 // pred_fallthru
        _
      // Predicated region
      $region17: #{actor_critic_forward.1} parent=11 // pred_check
        %p253 = pneg %p83
      $region18: #{actor_critic_forward.1} parent=11 // pred_check_branch
        %255 = sbr.rel (%p253) target = $region20
      $region19: #{actor_critic_forward.1} parent=11 // pred_region
        _
      $region20: #{actor_critic_forward.1} parent=11 // pred_fallthru
        _
      // Predicated region
      $region21: #{actor_critic_forward.1} parent=11 // pred_check
        %p256 = pneg %p104
      $region22: #{actor_critic_forward.1} parent=11 // pred_check_branch
        %258 = sbr.rel (%p256) target = $region24
      $region23: #{actor_critic_forward.1} parent=11 // pred_region
        _
      $region24: #{actor_critic_forward.1} parent=11 // pred_fallthru
        _
      // Predicated region
      $region25: #{actor_critic_forward.1} parent=11 // pred_check
        %p259 = pneg %p125
      $region26: #{actor_critic_forward.1} parent=11 // pred_check_branch
        %261 = sbr.rel (%p259) target = $region28
      $region27: #{actor_critic_forward.1} parent=11 // pred_region
        _
      $region28: #{actor_critic_forward.1} parent=11 // pred_fallthru
        _
      // Predicated region
      $region29: #{actor_critic_forward.1} parent=11 // pred_check
        %p262 = pneg %p146
      $region30: #{actor_critic_forward.1} parent=11 // pred_check_branch
        %264 = sbr.rel (%p262) target = $region32
      $region31: #{actor_critic_forward.1} parent=11 // pred_region
        _
      $region32: #{actor_critic_forward.1} parent=11 // pred_fallthru
        _
      // Predicated region
      $region33: #{actor_critic_forward.1} parent=11 // pred_check
        %p265 = pneg %p167
      $region34: #{actor_critic_forward.1} parent=11 // pred_check_branch
        %267 = sbr.rel (%p265) target = $region36
      $region35: #{actor_critic_forward.1} parent=11 // pred_region
        _
      $region36: #{actor_critic_forward.1} parent=11 // pred_fallthru
        _
      // Predicated region
      $region37: #{actor_critic_forward.1} parent=11 // pred_check
        %p268 = pneg %p188
      $region38: #{actor_critic_forward.1} parent=11 // pred_check_branch
        %270 = sbr.rel (%p268) target = $region40
      $region39: #{actor_critic_forward.1} parent=11 // pred_region
        _
      $region40: #{actor_critic_forward.1} parent=11 // pred_fallthru
        _
      // Predicated region
      $region41: #{actor_critic_forward.1} parent=11 // pred_check
        %p271 = pneg %p209
      $region42: #{actor_critic_forward.1} parent=11 // pred_check_branch
        %273 = sbr.rel (%p271) target = $region44
      $region43: #{actor_critic_forward.1} parent=11 // pred_region
        _
      $region44: #{actor_critic_forward.1} parent=11 // pred_fallthru
        _
    $region12: #{actor_critic_forward.1} parent=5 // pred_fallthru
      _
    %p274 = scmp.lt.s32.totalorder %s15, 2
    // Predicated region
    $region45: #{actor_critic_forward.1} parent=5 // pred_check
      %p275 = pneg %p274
    $region46: #{actor_critic_forward.1} parent=5 // pred_check_branch
      %277 = sbr.rel (%p275) target = $region48
    $region47: #{actor_critic_forward.1} parent=5 // pred_region
      // Predicated region
      $region49: #{actor_critic_forward.1} parent=47 // pred_check
        %p278 = pneg %p35
      $region50: #{actor_critic_forward.1} parent=47 // pred_check_branch
        %280 = sbr.rel (%p278) target = $region52
      $region51: #{actor_critic_forward.1} parent=47 // pred_region
        %p281 = scmp.lt.s32.totalorder %s15, 1
        %s282 = scalar_select %p281, %s15, 1
        %s283 = smul.addr %s282, 8
        %s284 = scalar_lea.vmem %s0, %s283
      $region52: #{actor_critic_forward.1} parent=47 // pred_fallthru
        _
    $region48: #{actor_critic_forward.1} parent=5 // pred_fallthru
      _
    %p285 = scmp.le.s32.totalorder 1, %s15
    %p286 = scmp.lt.s32.totalorder %s15, 3
    %p287 = pnand %p285, %p286
    %p288 = pneg %p287
    // Predicated region
    $region53: #{actor_critic_forward.1} parent=5 // pred_check
      _
    $region54: #{actor_critic_forward.1} parent=5 // pred_check_branch
      %290 = sbr.rel (%p287) target = $region56
    $region55: #{actor_critic_forward.1} parent=5 // pred_region
      %s291 = ssub.s32 %s15, 1
      %p292 = scmp.lt.s32.totalorder %s20, 1
      %s293 = scalar_select %p292, %s20, 1
      %s294 = smul.addr %s293, 8
      %s295 = scalar_lea.vmem %s0, %s294
      %p296 = pneg %p41
      %p297 = pneg %p38
      %p298 = pneg %p62
      %p299 = pneg %p59
      %p300 = pneg %p83
      %p301 = pneg %p80
      %p302 = pneg %p104
      %p303 = pneg %p101
      %p304 = pneg %p125
      %p305 = pneg %p122
      %p306 = pneg %p146
      %p307 = pneg %p143
      %p308 = pneg %p167
      %p309 = pneg %p164
      %p310 = pneg %p188
      %p311 = pneg %p185
      %p312 = pneg %p209
      %p313 = pneg %p206
      %p314 = pneg %p235
      %p315 = pneg %p232
      %p316 = scmp.lt.s32.totalorder %s20, 1
      %s317 = scalar_select %p316, %s20, 1
      %s318 = smul.addr %s317, 8
      %s319 = scalar_lea.vmem %s9, %s318
      %p320 = scmp.lt.s32.totalorder %s20, 1
      %s321 = scalar_select %p320, %s20, 1
      %s322 = smul.addr %s321, 8
      %s323 = scalar_lea.vmem %s0, %s322
      %p324 = scmp.lt.s32.totalorder %s20, 1
      %s325 = scalar_select %p324, %s20, 1
      %s326 = smul.addr %s325, 8
      %s327 = scalar_lea.vmem %s9, %s326
      %v329 = vld [vmem:[%s323] sm:$0xff]
      %v330 = vpack.c.bf16 %v329, %v329
      %v331 = vld [vmem:[%s1] sm:$0xff]
      %v332 = vld [vmem:[%s1 + $0x8] sm:$0xff]
      %v333 = vld [vmem:[%s2] sm:$0xf]
      %v335 = vlaneseq
      %v336 = vshrl.u32 %v335, 7
      %v337 = vsub.s32 0, %v336
      %v338 = vrot.slane %v333, %v337
      %v339 = vlaneseq
      %v340 = vshrl.u32 %v339, 7
      %v341 = vsub.s32 1, %v340
      %v342 = vrot.slane %v333, %v341
      %v343 = vlaneseq
      %v344 = vshrl.u32 %v343, 7
      %v345 = vsub.s32 2, %v344
      %v346 = vrot.slane %v333, %v345
      %v347 = vlaneseq
      %v348 = vshrl.u32 %v347, 7
      %v349 = vsub.s32 3, %v348
      %v350 = vrot.slane %v333, %v349
      %v357 = vunpack.c.l.b16 %v331
      %v358 = vunpack.c.h.b16 %v331
      %v359 = vunpack.c.l.b16 %v332
      %v360 = vunpack.c.h.b16 %v332
      %v361 = vpack.c.b16 %v357, %v357
      %v362 = vpack.c.b16 %v358, %v358
      %v363 = vpack.c.b16 %v359, %v359
      %v364 = vpack.c.b16 %v360, %v360
      %vm365 = vcmask 64512
      %v367 = vsel %vm365, %v330, 0
      %vm369 = vcmask 1043456
      %v371 = vsel %vm369, %v361, 0
      %v374 = vsel %vm369, %v362, 0
      %v377 = vsel %vm369, %v363, 0
      %v380 = vsel %vm369, %v364, 0
      %382 = vmatprep.subr.bf16.mxu0 %v374
      %383 = vmatpush1.bf16.msra.mxu0 %v371
      %384 = vmatprep.subr.bf16.mxu0 0
      %385 = vmatpush1.bf16.msra.mxu0 0
      %386 = vmatprep.subr.bf16.mxu0 0
      %387 = vmatpush1.bf16.msra.mxu0 0
      %388 = vmatprep.subr.bf16.mxu0 0
      %389 = vmatpush1.bf16.msra.mxu0 0
      %390 = vmatprep.subr.bf16.mxu0 0
      %391 = vmatpush1.bf16.msra.mxu0 0
      %392 = vmatprep.subr.bf16.mxu0 0
      %393 = vmatpush1.bf16.msra.mxu0 0
      %394 = vmatprep.subr.bf16.mxu0 0
      %395 = vmatpush1.bf16.msra.mxu0 0
      %396 = vmatprep.subr.bf16.mxu0 0
      %397 = vmatpush1.bf16.msra.mxu0 0
      %398 = vmatprep.subr.bf16.mxu0 0
      %399 = vmatpush1.bf16.msra.mxu0 0
      %400 = vmatprep.subr.bf16.mxu0 0
      %401 = vmatpush1.bf16.msra.mxu0 0
      %402 = vmatprep.subr.bf16.mxu0 0
      %403 = vmatpush1.bf16.msra.mxu0 0
      %404 = vmatprep.subr.bf16.mxu0 0
      %405 = vmatpush1.bf16.msra.mxu0 0
      %406 = vmatprep.subr.bf16.mxu0 0
      %407 = vmatpush1.bf16.msra.mxu0 0
      %408 = vmatprep.subr.bf16.mxu0 0
      %409 = vmatpush1.bf16.msra.mxu0 0
      %410 = vmatprep.subr.bf16.mxu0 0
      %411 = vmatpush1.bf16.msra.mxu0 0
      %412 = vmatprep.subr.bf16.mxu0 0
      %413 = vmatpush1.bf16.msra.mxu0 0
      %414 = vmatprep.mubr.bf16.mxu0 0
      %415 = vmatmul.mubr.bf16.gmra.mrb[0].mxu0 %v367
      %v416 = vpop.f32.mrb[0].mxu0
      %v417 = vadd.f32 %v338, %v416
      %v418 = vpop.f32.mrb[0].mxu0
      %v419 = vadd.f32 %v342, %v418
      %v420 = vpop.f32.mrb[0].mxu0
      %v421 = vpop.f32.mrb[0].mxu0
      %422 = vdwg.mxu0
      %423 = vmatprep.subr.bf16.mxu0 %v380
      %424 = vmatpush1.bf16.msra.mxu0 %v377
      %425 = vmatprep.subr.bf16.mxu0 0
      %426 = vmatpush1.bf16.msra.mxu0 0
      %427 = vmatprep.subr.bf16.mxu0 0
      %428 = vmatpush1.bf16.msra.mxu0 0
      %429 = vmatprep.subr.bf16.mxu0 0
      %430 = vmatpush1.bf16.msra.mxu0 0
      %431 = vmatprep.subr.bf16.mxu0 0
      %432 = vmatpush1.bf16.msra.mxu0 0
      %433 = vmatprep.subr.bf16.mxu0 0
      %434 = vmatpush1.bf16.msra.mxu0 0
      %435 = vmatprep.subr.bf16.mxu0 0
      %436 = vmatpush1.bf16.msra.mxu0 0
      %437 = vmatprep.subr.bf16.mxu0 0
      %438 = vmatpush1.bf16.msra.mxu0 0
      %439 = vmatprep.subr.bf16.mxu0 0
      %440 = vmatpush1.bf16.msra.mxu0 0
      %441 = vmatprep.subr.bf16.mxu0 0
      %442 = vmatpush1.bf16.msra.mxu0 0
      %443 = vmatprep.subr.bf16.mxu0 0
      %444 = vmatpush1.bf16.msra.mxu0 0
      %445 = vmatprep.subr.bf16.mxu0 0
      %446 = vmatpush1.bf16.msra.mxu0 0
      %447 = vmatprep.subr.bf16.mxu0 0
      %448 = vmatpush1.bf16.msra.mxu0 0
      %449 = vmatprep.subr.bf16.mxu0 0
      %450 = vmatpush1.bf16.msra.mxu0 0
      %451 = vmatprep.subr.bf16.mxu0 0
      %452 = vmatpush1.bf16.msra.mxu0 0
      %453 = vmatprep.subr.bf16.mxu0 0
      %454 = vmatpush1.bf16.msra.mxu0 0
      %455 = vmatprep.mubr.bf16.mxu0 0
      %456 = vmatmul.mubr.bf16.gmra.mrb[0].mxu0 %v367
      %v457 = vpop.f32.mrb[0].mxu0
      %v458 = vadd.f32 %v346, %v457
      %v459 = vpop.f32.mrb[0].mxu0
      %v460 = vadd.f32 %v350, %v459
      %v461 = vpop.f32.mrb[0].mxu0
      %v462 = vpop.f32.mrb[0].mxu0
      %463 = vdwg.mxu0
      %v464 = vmax.f32 %v417, 0.0
      %v465 = vmax.f32 %v419, 0.0
      %v466 = vmax.f32 %v458, 0.0
      %v467 = vmax.f32 %v460, 0.0
      %v468 = vpack.c.bf16 %v464, %v464
      %v469 = vpack.c.bf16 %v465, %v465
      %v470 = vpack.c.bf16 %v466, %v466
      %v471 = vpack.c.bf16 %v467, %v467
      %v472 = vld [vmem:[%s3] sm:$0xff]
      %v473 = vld [vmem:[%s3 + $0x8] sm:$0xff]
      %v474 = vld [vmem:[%s3 + $0x10] sm:$0xff]
      %v475 = vld [vmem:[%s3 + $0x18] sm:$0xff]
      %v476 = vld [vmem:[%s3 + $0x20] sm:$0xff]
      %v477 = vld [vmem:[%s3 + $0x28] sm:$0xff]
      %v478 = vld [vmem:[%s3 + $0x30] sm:$0xff]
      %v479 = vld [vmem:[%s3 + $0x38] sm:$0xff]
      %v480 = vld [vmem:[%s3 + $0x40] sm:$0xff]
      %v481 = vld [vmem:[%s3 + $0x48] sm:$0xff]
      %v482 = vld [vmem:[%s3 + $0x50] sm:$0xff]
      %v483 = vld [vmem:[%s3 + $0x58] sm:$0xff]
      %v484 = vld [vmem:[%s3 + $0x60] sm:$0xff]
      %v485 = vld [vmem:[%s3 + $0x68] sm:$0xff]
      %v486 = vld [vmem:[%s3 + $0x70] sm:$0xff]
      %v487 = vld [vmem:[%s3 + $0x78] sm:$0xff]
      %v488 = vld [vmem:[%s3 + $0x80] sm:$0xff]
      %v489 = vld [vmem:[%s3 + $0x88] sm:$0xff]
      %v490 = vld [vmem:[%s3 + $0x90] sm:$0xff]
      %v491 = vld [vmem:[%s3 + $0x98] sm:$0xff]
      %v492 = vld [vmem:[%s3 + $0xa0] sm:$0xff]
      %v493 = vld [vmem:[%s3 + $0xa8] sm:$0xff]
      %v494 = vld [vmem:[%s3 + $0xb0] sm:$0xff]
      %v495 = vld [vmem:[%s3 + $0xb8] sm:$0xff]
      %v496 = vld [vmem:[%s3 + $0xc0] sm:$0xff]
      %v497 = vld [vmem:[%s3 + $0xc8] sm:$0xff]
      %v498 = vld [vmem:[%s3 + $0xd0] sm:$0xff]
      %v499 = vld [vmem:[%s3 + $0xd8] sm:$0xff]
      %v500 = vld [vmem:[%s3 + $0xe0] sm:$0xff]
      %v501 = vld [vmem:[%s3 + $0xe8] sm:$0xff]
      %v502 = vld [vmem:[%s3 + $0xf0] sm:$0xff]
      %v503 = vld [vmem:[%s3 + $0xf8] sm:$0xff]
      %v504 = vld [vmem:[%s3 + $0x100] sm:$0xff]
      %v505 = vld [vmem:[%s3 + $0x108] sm:$0xff]
      %v506 = vld [vmem:[%s3 + $0x110] sm:$0xff]
      %v507 = vld [vmem:[%s3 + $0x118] sm:$0xff]
      %v508 = vld [vmem:[%s3 + $0x120] sm:$0xff]
      %v509 = vld [vmem:[%s3 + $0x128] sm:$0xff]
      %v510 = vld [vmem:[%s3 + $0x130] sm:$0xff]
      %v511 = vld [vmem:[%s3 + $0x138] sm:$0xff]
      %v512 = vld [vmem:[%s3 + $0x140] sm:$0xff]
      %v513 = vld [vmem:[%s3 + $0x148] sm:$0xff]
      %v514 = vld [vmem:[%s3 + $0x150] sm:$0xff]
      %v515 = vld [vmem:[%s3 + $0x158] sm:$0xff]
      %v516 = vld [vmem:[%s3 + $0x160] sm:$0xff]
      %v517 = vld [vmem:[%s3 + $0x168] sm:$0xff]
      %v518 = vld [vmem:[%s3 + $0x170] sm:$0xff]
      %v519 = vld [vmem:[%s3 + $0x178] sm:$0xff]
      %v520 = vld [vmem:[%s3 + $0x180] sm:$0xff]
      %v521 = vld [vmem:[%s3 + $0x188] sm:$0xff]
      %v522 = vld [vmem:[%s3 + $0x190] sm:$0xff]
      %v523 = vld [vmem:[%s3 + $0x198] sm:$0xff]
      %v524 = vld [vmem:[%s3 + $0x1a0] sm:$0xff]
      %v525 = vld [vmem:[%s3 + $0x1a8] sm:$0xff]
      %v526 = vld [vmem:[%s3 + $0x1b0] sm:$0xff]
      %v527 = vld [vmem:[%s3 + $0x1b8] sm:$0xff]
      %v528 = vld [vmem:[%s3 + $0x1c0] sm:$0xff]
      %v529 = vld [vmem:[%s3 + $0x1c8] sm:$0xff]
      %v530 = vld [vmem:[%s3 + $0x1d0] sm:$0xff]
      %v531 = vld [vmem:[%s3 + $0x1d8] sm:$0xff]
      %v532 = vld [vmem:[%s3 + $0x1e0] sm:$0xff]
      %v533 = vld [vmem:[%s3 + $0x1e8] sm:$0xff]
      %v534 = vld [vmem:[%s3 + $0x1f0] sm:$0xff]
      %v535 = vld [vmem:[%s3 + $0x1f8] sm:$0xff]
      %v536 = vld [vmem:[%s4] sm:$0x3]
      %v538 = vlaneseq
      %v539 = vshrl.u32 %v538, 7
      %v540 = vsub.s32 0, %v539
      %v541 = vrot.slane %v536, %v540
      %v542 = vlaneseq
      %v543 = vshrl.u32 %v542, 7
      %v544 = vsub.s32 1, %v543
      %v545 = vrot.slane %v536, %v544
      %v612 = vunpack.c.l.b16 %v472
      %v613 = vunpack.c.h.b16 %v472
      %v614 = vunpack.c.l.b16 %v473
      %v615 = vunpack.c.h.b16 %v473
      %v616 = vunpack.c.l.b16 %v474
      %v617 = vunpack.c.h.b16 %v474
      %v618 = vunpack.c.l.b16 %v475
      %v619 = vunpack.c.h.b16 %v475
      %v620 = vunpack.c.l.b16 %v476
      %v621 = vunpack.c.h.b16 %v476
      %v622 = vunpack.c.l.b16 %v477
      %v623 = vunpack.c.h.b16 %v477
      %v624 = vunpack.c.l.b16 %v478
      %v625 = vunpack.c.h.b16 %v478
      %v626 = vunpack.c.l.b16 %v479
      %v627 = vunpack.c.h.b16 %v479
      %v628 = vunpack.c.l.b16 %v480
      %v629 = vunpack.c.h.b16 %v480
      %v630 = vunpack.c.l.b16 %v481
      %v631 = vunpack.c.h.b16 %v481
      %v632 = vunpack.c.l.b16 %v482
      %v633 = vunpack.c.h.b16 %v482
      %v634 = vunpack.c.l.b16 %v483
      %v635 = vunpack.c.h.b16 %v483
      %v636 = vunpack.c.l.b16 %v484
      %v637 = vunpack.c.h.b16 %v484
      %v638 = vunpack.c.l.b16 %v485
      %v639 = vunpack.c.h.b16 %v485
      %v640 = vunpack.c.l.b16 %v486
      %v641 = vunpack.c.h.b16 %v486
      %v642 = vunpack.c.l.b16 %v487
      %v643 = vunpack.c.h.b16 %v487
      %v644 = vunpack.c.l.b16 %v488
      %v645 = vunpack.c.h.b16 %v488
      %v646 = vunpack.c.l.b16 %v489
      %v647 = vunpack.c.h.b16 %v489
      %v648 = vunpack.c.l.b16 %v490
      %v649 = vunpack.c.h.b16 %v490
      %v650 = vunpack.c.l.b16 %v491
      %v651 = vunpack.c.h.b16 %v491
      %v652 = vunpack.c.l.b16 %v492
      %v653 = vunpack.c.h.b16 %v492
      %v654 = vunpack.c.l.b16 %v493
      %v655 = vunpack.c.h.b16 %v493
      %v656 = vunpack.c.l.b16 %v494
      %v657 = vunpack.c.h.b16 %v494
      %v658 = vunpack.c.l.b16 %v495
      %v659 = vunpack.c.h.b16 %v495
      %v660 = vunpack.c.l.b16 %v496
      %v661 = vunpack.c.h.b16 %v496
      %v662 = vunpack.c.l.b16 %v497
      %v663 = vunpack.c.h.b16 %v497
      %v664 = vunpack.c.l.b16 %v498
      %v665 = vunpack.c.h.b16 %v498
      %v666 = vunpack.c.l.b16 %v499
      %v667 = vunpack.c.h.b16 %v499
      %v668 = vunpack.c.l.b16 %v500
      %v669 = vunpack.c.h.b16 %v500
      %v670 = vunpack.c.l.b16 %v501
      %v671 = vunpack.c.h.b16 %v501
      %v672 = vunpack.c.l.b16 %v502
      %v673 = vunpack.c.h.b16 %v502
      %v674 = vunpack.c.l.b16 %v503
      %v675 = vunpack.c.h.b16 %v503
      %v676 = vunpack.c.l.b16 %v504
      %v677 = vunpack.c.h.b16 %v504
      %v678 = vunpack.c.l.b16 %v505
      %v679 = vunpack.c.h.b16 %v505
      %v680 = vunpack.c.l.b16 %v506
      %v681 = vunpack.c.h.b16 %v506
      %v682 = vunpack.c.l.b16 %v507
      %v683 = vunpack.c.h.b16 %v507
      %v684 = vunpack.c.l.b16 %v508
      %v685 = vunpack.c.h.b16 %v508
      %v686 = vunpack.c.l.b16 %v509
      %v687 = vunpack.c.h.b16 %v509
      %v688 = vunpack.c.l.b16 %v510
      %v689 = vunpack.c.h.b16 %v510
      %v690 = vunpack.c.l.b16 %v511
      %v691 = vunpack.c.h.b16 %v511
      %v692 = vunpack.c.l.b16 %v512
      %v693 = vunpack.c.h.b16 %v512
      %v694 = vunpack.c.l.b16 %v513
      %v695 = vunpack.c.h.b16 %v513
      %v696 = vunpack.c.l.b16 %v514
      %v697 = vunpack.c.h.b16 %v514
      %v698 = vunpack.c.l.b16 %v515
      %v699 = vunpack.c.h.b16 %v515
      %v700 = vunpack.c.l.b16 %v516
      %v701 = vunpack.c.h.b16 %v516
      %v702 = vunpack.c.l.b16 %v517
      %v703 = vunpack.c.h.b16 %v517
      %v704 = vunpack.c.l.b16 %v518
      %v705 = vunpack.c.h.b16 %v518
      %v706 = vunpack.c.l.b16 %v519
      %v707 = vunpack.c.h.b16 %v519
      %v708 = vunpack.c.l.b16 %v520
      %v709 = vunpack.c.h.b16 %v520
      %v710 = vunpack.c.l.b16 %v521
      %v711 = vunpack.c.h.b16 %v521
      %v712 = vunpack.c.l.b16 %v522
      %v713 = vunpack.c.h.b16 %v522
      %v714 = vunpack.c.l.b16 %v523
      %v715 = vunpack.c.h.b16 %v523
      %v716 = vunpack.c.l.b16 %v524
      %v717 = vunpack.c.h.b16 %v524
      %v718 = vunpack.c.l.b16 %v525
      %v719 = vunpack.c.h.b16 %v525
      %v720 = vunpack.c.l.b16 %v526
      %v721 = vunpack.c.h.b16 %v526
      %v722 = vunpack.c.l.b16 %v527
      %v723 = vunpack.c.h.b16 %v527
      %v724 = vunpack.c.l.b16 %v528
      %v725 = vunpack.c.h.b16 %v528
      %v726 = vunpack.c.l.b16 %v529
      %v727 = vunpack.c.h.b16 %v529
      %v728 = vunpack.c.l.b16 %v530
      %v729 = vunpack.c.h.b16 %v530
      %v730 = vunpack.c.l.b16 %v531
      %v731 = vunpack.c.h.b16 %v531
      %v732 = vunpack.c.l.b16 %v532
      %v733 = vunpack.c.h.b16 %v532
      %v734 = vunpack.c.l.b16 %v533
      %v735 = vunpack.c.h.b16 %v533
      %v736 = vunpack.c.l.b16 %v534
      %v737 = vunpack.c.h.b16 %v534
      %v738 = vunpack.c.l.b16 %v535
      %v739 = vunpack.c.h.b16 %v535
      %v740 = vpack.c.b16 %v614, %v612
      %v741 = vpack.c.b16 %v615, %v613
      %v742 = vpack.c.b16 %v618, %v616
      %v743 = vpack.c.b16 %v619, %v617
      %v744 = vpack.c.b16 %v622, %v620
      %v745 = vpack.c.b16 %v623, %v621
      %v746 = vpack.c.b16 %v626, %v624
      %v747 = vpack.c.b16 %v627, %v625
      %v748 = vpack.c.b16 %v630, %v628
      %v749 = vpack.c.b16 %v631, %v629
      %v750 = vpack.c.b16 %v634, %v632
      %v751 = vpack.c.b16 %v635, %v633
      %v752 = vpack.c.b16 %v638, %v636
      %v753 = vpack.c.b16 %v639, %v637
      %v754 = vpack.c.b16 %v642, %v640
      %v755 = vpack.c.b16 %v643, %v641
      %v756 = vpack.c.b16 %v646, %v644
      %v757 = vpack.c.b16 %v647, %v645
      %v758 = vpack.c.b16 %v650, %v648
      %v759 = vpack.c.b16 %v651, %v649
      %v760 = vpack.c.b16 %v654, %v652
      %v761 = vpack.c.b16 %v655, %v653
      %v762 = vpack.c.b16 %v658, %v656
      %v763 = vpack.c.b16 %v659, %v657
      %v764 = vpack.c.b16 %v662, %v660
      %v765 = vpack.c.b16 %v663, %v661
      %v766 = vpack.c.b16 %v666, %v664
      %v767 = vpack.c.b16 %v667, %v665
      %v768 = vpack.c.b16 %v670, %v668
      %v769 = vpack.c.b16 %v671, %v669
      %v770 = vpack.c.b16 %v674, %v672
      %v771 = vpack.c.b16 %v675, %v673
      %v772 = vpack.c.b16 %v678, %v676
      %v773 = vpack.c.b16 %v679, %v677
      %v774 = vpack.c.b16 %v682, %v680
      %v775 = vpack.c.b16 %v683, %v681
      %v776 = vpack.c.b16 %v686, %v684
      %v777 = vpack.c.b16 %v687, %v685
      %v778 = vpack.c.b16 %v690, %v688
      %v779 = vpack.c.b16 %v691, %v689
      %v780 = vpack.c.b16 %v694, %v692
      %v781 = vpack.c.b16 %v695, %v693
      %v782 = vpack.c.b16 %v698, %v696
      %v783 = vpack.c.b16 %v699, %v697
      %v784 = vpack.c.b16 %v702, %v700
      %v785 = vpack.c.b16 %v703, %v701
      %v786 = vpack.c.b16 %v706, %v704
      %v787 = vpack.c.b16 %v707, %v705
      %v788 = vpack.c.b16 %v710, %v708
      %v789 = vpack.c.b16 %v711, %v709
      %v790 = vpack.c.b16 %v714, %v712
      %v791 = vpack.c.b16 %v715, %v713
      %v792 = vpack.c.b16 %v718, %v716
      %v793 = vpack.c.b16 %v719, %v717
      %v794 = vpack.c.b16 %v722, %v720
      %v795 = vpack.c.b16 %v723, %v721
      %v796 = vpack.c.b16 %v726, %v724
      %v797 = vpack.c.b16 %v727, %v725
      %v798 = vpack.c.b16 %v730, %v728
      %v799 = vpack.c.b16 %v731, %v729
      %v800 = vpack.c.b16 %v734, %v732
      %v801 = vpack.c.b16 %v735, %v733
      %v802 = vpack.c.b16 %v738, %v736
      %v803 = vpack.c.b16 %v739, %v737
      %868 = vmatprep.subr.bf16.mxu0 %v741
      %869 = vmatpush1.bf16.msra.mxu0 %v740
      %870 = vmatprep.subr.bf16.mxu0 %v743
      %871 = vmatpush1.bf16.msra.mxu0 %v742
      %872 = vmatprep.subr.bf16.mxu0 %v745
      %873 = vmatpush1.bf16.msra.mxu0 %v744
      %874 = vmatprep.subr.bf16.mxu0 %v747
      %875 = vmatpush1.bf16.msra.mxu0 %v746
      %876 = vmatprep.subr.bf16.mxu0 %v749
      %877 = vmatpush1.bf16.msra.mxu0 %v748
      %878 = vmatprep.subr.bf16.mxu0 %v751
      %879 = vmatpush1.bf16.msra.mxu0 %v750
      %880 = vmatprep.subr.bf16.mxu0 %v753
      %881 = vmatpush1.bf16.msra.mxu0 %v752
      %882 = vmatprep.subr.bf16.mxu0 %v755
      %883 = vmatpush1.bf16.msra.mxu0 %v754
      %884 = vmatprep.subr.bf16.mxu0 %v757
      %885 = vmatpush1.bf16.msra.mxu0 %v756
      %886 = vmatprep.subr.bf16.mxu0 %v759
      %887 = vmatpush1.bf16.msra.mxu0 %v758
      %888 = vmatprep.subr.bf16.mxu0 %v761
      %889 = vmatpush1.bf16.msra.mxu0 %v760
      %890 = vmatprep.subr.bf16.mxu0 %v763
      %891 = vmatpush1.bf16.msra.mxu0 %v762
      %892 = vmatprep.subr.bf16.mxu0 %v765
      %893 = vmatpush1.bf16.msra.mxu0 %v764
      %894 = vmatprep.subr.bf16.mxu0 %v767
      %895 = vmatpush1.bf16.msra.mxu0 %v766
      %896 = vmatprep.subr.bf16.mxu0 %v769
      %897 = vmatpush1.bf16.msra.mxu0 %v768
      %898 = vmatprep.subr.bf16.mxu0 %v771
      %899 = vmatpush1.bf16.msra.mxu0 %v770
      %900 = vmatprep.mubr.bf16.mxu0 %v469
      %901 = vmatmul.mubr.bf16.gmra.mrb[0].mxu0 %v468
      %v902 = vpop.f32.mrb[0].mxu0
      %v903 = vadd.f32 %v541, %v902
      %v904 = vpop.f32.mrb[0].mxu0
      %v905 = vadd.f32 %v545, %v904
      %v906 = vpop.f32.mrb[0].mxu0
      %v907 = vpop.f32.mrb[0].mxu0
      %908 = vdwg.mxu0
      %909 = vmatprep.subr.bf16.mxu0 %v773
      %910 = vmatpush1.bf16.msra.mxu0 %v772
      %911 = vmatprep.subr.bf16.mxu0 %v775
      %912 = vmatpush1.bf16.msra.mxu0 %v774
      %913 = vmatprep.subr.bf16.mxu0 %v777
      %914 = vmatpush1.bf16.msra.mxu0 %v776
      %915 = vmatprep.subr.bf16.mxu0 %v779
      %916 = vmatpush1.bf16.msra.mxu0 %v778
      %917 = vmatprep.subr.bf16.mxu0 %v781
      %918 = vmatpush1.bf16.msra.mxu0 %v780
      %919 = vmatprep.subr.bf16.mxu0 %v783
      %920 = vmatpush1.bf16.msra.mxu0 %v782
      %921 = vmatprep.subr.bf16.mxu0 %v785
      %922 = vmatpush1.bf16.msra.mxu0 %v784
      %923 = vmatprep.subr.bf16.mxu0 %v787
      %924 = vmatpush1.bf16.msra.mxu0 %v786
      %925 = vmatprep.subr.bf16.mxu0 %v789
      %926 = vmatpush1.bf16.msra.mxu0 %v788
      %927 = vmatprep.subr.bf16.mxu0 %v791
      %928 = vmatpush1.bf16.msra.mxu0 %v790
      %929 = vmatprep.subr.bf16.mxu0 %v793
      %930 = vmatpush1.bf16.msra.mxu0 %v792
      %931 = vmatprep.subr.bf16.mxu0 %v795
      %932 = vmatpush1.bf16.msra.mxu0 %v794
      %933 = vmatprep.subr.bf16.mxu0 %v797
      %934 = vmatpush1.bf16.msra.mxu0 %v796
      %935 = vmatprep.subr.bf16.mxu0 %v799
      %936 = vmatpush1.bf16.msra.mxu0 %v798
      %937 = vmatprep.subr.bf16.mxu0 %v801
      %938 = vmatpush1.bf16.msra.mxu0 %v800
      %939 = vmatprep.subr.bf16.mxu0 %v803
      %940 = vmatpush1.bf16.msra.mxu0 %v802
      %941 = vmatprep.mubr.bf16.mxu0 %v471
      %942 = vmatmul.mubr.bf16.gmra.mrb[0].mxu0 %v470
      %v943 = vpop.f32.mrb[0].mxu0
      %v944 = vadd.f32 %v903, %v943
      %v945 = vpop.f32.mrb[0].mxu0
      %v946 = vadd.f32 %v905, %v945
      %v947 = vpop.f32.mrb[0].mxu0
      %v948 = vpop.f32.mrb[0].mxu0
      %949 = vdwg.mxu0
      %v950 = vmax.f32 %v944, 0.0
      %v951 = vmax.f32 %v946, 0.0
      %v952 = vpack.c.bf16 %v950, %v950
      %v953 = vpack.c.bf16 %v951, %v951
      %v954 = vld [vmem:[%s5] sm:$0xf]
      %v955 = vld [vmem:[%s5 + $0x4] sm:$0xf]
      %v956 = vld [vmem:[%s5 + $0x8] sm:$0xf]
      %v957 = vld [vmem:[%s5 + $0xc] sm:$0xf]
      %v958 = vld [vmem:[%s5 + $0x10] sm:$0xf]
      %v959 = vld [vmem:[%s5 + $0x14] sm:$0xf]
      %v960 = vld [vmem:[%s5 + $0x18] sm:$0xf]
      %v961 = vld [vmem:[%s5 + $0x1c] sm:$0xf]
      %v962 = vld [vmem:[%s5 + $0x20] sm:$0xf]
      %v963 = vld [vmem:[%s5 + $0x24] sm:$0xf]
      %v964 = vld [vmem:[%s5 + $0x28] sm:$0xf]
      %v965 = vld [vmem:[%s5 + $0x2c] sm:$0xf]
      %v966 = vld [vmem:[%s5 + $0x30] sm:$0xf]
      %v967 = vld [vmem:[%s5 + $0x34] sm:$0xf]
      %v968 = vld [vmem:[%s5 + $0x38] sm:$0xf]
      %v969 = vld [vmem:[%s5 + $0x3c] sm:$0xf]
      %v970 = vld [vmem:[%s5 + $0x40] sm:$0xf]
      %v971 = vld [vmem:[%s5 + $0x44] sm:$0xf]
      %v972 = vld [vmem:[%s5 + $0x48] sm:$0xf]
      %v973 = vld [vmem:[%s5 + $0x4c] sm:$0xf]
      %v974 = vld [vmem:[%s5 + $0x50] sm:$0xf]
      %v975 = vld [vmem:[%s5 + $0x54] sm:$0xf]
      %v976 = vld [vmem:[%s5 + $0x58] sm:$0xf]
      %v977 = vld [vmem:[%s5 + $0x5c] sm:$0xf]
      %v978 = vld [vmem:[%s5 + $0x60] sm:$0xf]
      %v979 = vld [vmem:[%s5 + $0x64] sm:$0xf]
      %v980 = vld [vmem:[%s5 + $0x68] sm:$0xf]
      %v981 = vld [vmem:[%s5 + $0x6c] sm:$0xf]
      %v982 = vld [vmem:[%s5 + $0x70] sm:$0xf]
      %v983 = vld [vmem:[%s5 + $0x74] sm:$0xf]
      %v984 = vld [vmem:[%s5 + $0x78] sm:$0xf]
      %v985 = vld [vmem:[%s5 + $0x7c] sm:$0xf]
      %v986 = vld [vmem:[%s6] sm:$0x1]
      %v988 = vlaneseq
      %v989 = vshrl.u32 %v988, 7
      %v990 = vsub.s32 0, %v989
      %v991 = vrot.slane %v986, %v990
      %v1025 = vunpack.c.l.b16 %v954
      %v1026 = vunpack.c.l.b16 %v955
      %v1027 = vunpack.c.l.b16 %v956
      %v1028 = vunpack.c.l.b16 %v957
      %v1029 = vunpack.c.l.b16 %v958
      %v1030 = vunpack.c.l.b16 %v959
      %v1031 = vunpack.c.l.b16 %v960
      %v1032 = vunpack.c.l.b16 %v961
      %v1033 = vunpack.c.l.b16 %v962
      %v1034 = vunpack.c.l.b16 %v963
      %v1035 = vunpack.c.l.b16 %v964
      %v1036 = vunpack.c.l.b16 %v965
      %v1037 = vunpack.c.l.b16 %v966
      %v1038 = vunpack.c.l.b16 %v967
      %v1039 = vunpack.c.l.b16 %v968
      %v1040 = vunpack.c.l.b16 %v969
      %v1041 = vunpack.c.l.b16 %v970
      %v1042 = vunpack.c.l.b16 %v971
      %v1043 = vunpack.c.l.b16 %v972
      %v1044 = vunpack.c.l.b16 %v973
      %v1045 = vunpack.c.l.b16 %v974
      %v1046 = vunpack.c.l.b16 %v975
      %v1047 = vunpack.c.l.b16 %v976
      %v1048 = vunpack.c.l.b16 %v977
      %v1049 = vunpack.c.l.b16 %v978
      %v1050 = vunpack.c.l.b16 %v979
      %v1051 = vunpack.c.l.b16 %v980
      %v1052 = vunpack.c.l.b16 %v981
      %v1053 = vunpack.c.l.b16 %v982
      %v1054 = vunpack.c.l.b16 %v983
      %v1055 = vunpack.c.l.b16 %v984
      %v1056 = vunpack.c.l.b16 %v985
      %v1057 = vpack.c.b16 %v1026, %v1025
      %v1058 = vpack.c.b16 %v1028, %v1027
      %v1059 = vpack.c.b16 %v1030, %v1029
      %v1060 = vpack.c.b16 %v1032, %v1031
      %v1061 = vpack.c.b16 %v1034, %v1033
      %v1062 = vpack.c.b16 %v1036, %v1035
      %v1063 = vpack.c.b16 %v1038, %v1037
      %v1064 = vpack.c.b16 %v1040, %v1039
      %v1065 = vpack.c.b16 %v1042, %v1041
      %v1066 = vpack.c.b16 %v1044, %v1043
      %v1067 = vpack.c.b16 %v1046, %v1045
      %v1068 = vpack.c.b16 %v1048, %v1047
      %v1069 = vpack.c.b16 %v1050, %v1049
      %v1070 = vpack.c.b16 %v1052, %v1051
      %v1071 = vpack.c.b16 %v1054, %v1053
      %v1072 = vpack.c.b16 %v1056, %v1055
      %1089 = vmatprep.subr.bf16.mxu0 0
      %1090 = vmatpush1.bf16.msra.mxu0 %v1057
      %1091 = vmatprep.subr.bf16.mxu0 0
      %1092 = vmatpush1.bf16.msra.mxu0 %v1058
      %1093 = vmatprep.subr.bf16.mxu0 0
      %1094 = vmatpush1.bf16.msra.mxu0 %v1059
      %1095 = vmatprep.subr.bf16.mxu0 0
      %1096 = vmatpush1.bf16.msra.mxu0 %v1060
      %1097 = vmatprep.subr.bf16.mxu0 0
      %1098 = vmatpush1.bf16.msra.mxu0 %v1061
      %1099 = vmatprep.subr.bf16.mxu0 0
      %1100 = vmatpush1.bf16.msra.mxu0 %v1062
      %1101 = vmatprep.subr.bf16.mxu0 0
      %1102 = vmatpush1.bf16.msra.mxu0 %v1063
      %1103 = vmatprep.subr.bf16.mxu0 0
      %1104 = vmatpush1.bf16.msra.mxu0 %v1064
      %1105 = vmatprep.subr.bf16.mxu0 0
      %1106 = vmatpush1.bf16.msra.mxu0 %v1065
      %1107 = vmatprep.subr.bf16.mxu0 0
      %1108 = vmatpush1.bf16.msra.mxu0 %v1066
      %1109 = vmatprep.subr.bf16.mxu0 0
      %1110 = vmatpush1.bf16.msra.mxu0 %v1067
      %1111 = vmatprep.subr.bf16.mxu0 0
      %1112 = vmatpush1.bf16.msra.mxu0 %v1068
      %1113 = vmatprep.subr.bf16.mxu0 0
      %1114 = vmatpush1.bf16.msra.mxu0 %v1069
      %1115 = vmatprep.subr.bf16.mxu0 0
      %1116 = vmatpush1.bf16.msra.mxu0 %v1070
      %1117 = vmatprep.subr.bf16.mxu0 0
      %1118 = vmatpush1.bf16.msra.mxu0 %v1071
      %1119 = vmatprep.subr.bf16.mxu0 0
      %1120 = vmatpush1.bf16.msra.mxu0 %v1072
      %1121 = vmatprep.mubr.bf16.mxu0 %v953
      %1122 = vmatmul.mubr.bf16.gmra.mrb[0].mxu0 %v952
      %v1123 = vpop.f32.mrb[0].mxu0
      %v1124 = vadd.f32 %v991, %v1123
      %v1125 = vpop.f32.mrb[0].mxu0
      %v1126 = vpop.f32.mrb[0].mxu0
      %v1127 = vpop.f32.mrb[0].mxu0
      %1128 = vdwg.mxu0
      %v1129 = vmax.f32 %v1124, 0.0
      %v1130 = vpack.c.bf16 %v1129, %v1129
      %v1131 = vld [vmem:[%s7] sm:$0xf]
      %v1132 = vld [vmem:[%s7 + $0x4] sm:$0xf]
      %v1133 = vld [vmem:[%s7 + $0x8] sm:$0xf]
      %v1134 = vld [vmem:[%s7 + $0xc] sm:$0xf]
      %v1135 = vld [vmem:[%s7 + $0x10] sm:$0xf]
      %v1136 = vld [vmem:[%s7 + $0x14] sm:$0xf]
      %v1137 = vld [vmem:[%s7 + $0x18] sm:$0xf]
      %v1138 = vld [vmem:[%s7 + $0x1c] sm:$0xf]
      %v1139 = vld [vmem:[%s7 + $0x20] sm:$0xf]
      %v1140 = vld [vmem:[%s7 + $0x24] sm:$0xf]
      %v1141 = vld [vmem:[%s7 + $0x28] sm:$0xf]
      %v1142 = vld [vmem:[%s7 + $0x2c] sm:$0xf]
      %v1143 = vld [vmem:[%s7 + $0x30] sm:$0xf]
      %v1144 = vld [vmem:[%s7 + $0x34] sm:$0xf]
      %v1145 = vld [vmem:[%s7 + $0x38] sm:$0xf]
      %v1146 = vld [vmem:[%s7 + $0x3c] sm:$0xf]
      %v1147 = vld [vmem:[%s8] sm:$0x1]
      %v1149 = vlaneseq
      %v1150 = vshrl.u32 %v1149, 7
      %v1151 = vsub.s32 0, %v1150
      %v1152 = vrot.slane %v1147, %v1151
      %v1170 = vunpack.c.l.b16 %v1131
      %v1171 = vunpack.c.l.b16 %v1132
      %v1172 = vunpack.c.l.b16 %v1133
      %v1173 = vunpack.c.l.b16 %v1134
      %v1174 = vunpack.c.l.b16 %v1135
      %v1175 = vunpack.c.l.b16 %v1136
      %v1176 = vunpack.c.l.b16 %v1137
      %v1177 = vunpack.c.l.b16 %v1138
      %v1178 = vunpack.c.l.b16 %v1139
      %v1179 = vunpack.c.l.b16 %v1140
      %v1180 = vunpack.c.l.b16 %v1141
      %v1181 = vunpack.c.l.b16 %v1142
      %v1182 = vunpack.c.l.b16 %v1143
      %v1183 = vunpack.c.l.b16 %v1144
      %v1184 = vunpack.c.l.b16 %v1145
      %v1185 = vunpack.c.l.b16 %v1146
      %v1186 = vpack.c.b16 %v1171, %v1170
      %v1187 = vpack.c.b16 %v1173, %v1172
      %v1188 = vpack.c.b16 %v1175, %v1174
      %v1189 = vpack.c.b16 %v1177, %v1176
      %v1190 = vpack.c.b16 %v1179, %v1178
      %v1191 = vpack.c.b16 %v1181, %v1180
      %v1192 = vpack.c.b16 %v1183, %v1182
      %v1193 = vpack.c.b16 %v1185, %v1184
      %1202 = vmatprep.subr.bf16.mxu0 0
      %1203 = vmatpush1.bf16.msra.mxu0 %v1186
      %1204 = vmatprep.subr.bf16.mxu0 0
      %1205 = vmatpush1.bf16.msra.mxu0 %v1187
      %1206 = vmatprep.subr.bf16.mxu0 0
      %1207 = vmatpush1.bf16.msra.mxu0 %v1188
      %1208 = vmatprep.subr.bf16.mxu0 0
      %1209 = vmatpush1.bf16.msra.mxu0 %v1189
      %1210 = vmatprep.subr.bf16.mxu0 0
      %1211 = vmatpush1.bf16.msra.mxu0 %v1190
      %1212 = vmatprep.subr.bf16.mxu0 0
      %1213 = vmatpush1.bf16.msra.mxu0 %v1191
      %1214 = vmatprep.subr.bf16.mxu0 0
      %1215 = vmatpush1.bf16.msra.mxu0 %v1192
      %1216 = vmatprep.subr.bf16.mxu0 0
      %1217 = vmatpush1.bf16.msra.mxu0 %v1193
      %1218 = vmatprep.subr.bf16.mxu0 0
      %1219 = vmatpush1.bf16.msra.mxu0 0
      %1220 = vmatprep.subr.bf16.mxu0 0
      %1221 = vmatpush1.bf16.msra.mxu0 0
      %1222 = vmatprep.subr.bf16.mxu0 0
      %1223 = vmatpush1.bf16.msra.mxu0 0
      %1224 = vmatprep.subr.bf16.mxu0 0
      %1225 = vmatpush1.bf16.msra.mxu0 0
      %1226 = vmatprep.subr.bf16.mxu0 0
      %1227 = vmatpush1.bf16.msra.mxu0 0
      %1228 = vmatprep.subr.bf16.mxu0 0
      %1229 = vmatpush1.bf16.msra.mxu0 0
      %1230 = vmatprep.subr.bf16.mxu0 0
      %1231 = vmatpush1.bf16.msra.mxu0 0
      %1232 = vmatprep.subr.bf16.mxu0 0
      %1233 = vmatpush1.bf16.msra.mxu0 0
      %1234 = vmatprep.mubr.bf16.mxu0 0
      %1235 = vmatmul.mubr.bf16.gmra.mrb[0].mxu0 %v1130
      %v1236 = vpop.f32.mrb[0].mxu0
      %v1237 = vadd.f32 %v1152, %v1236
      %v1238 = vpop.f32.mrb[0].mxu0
      %v1239 = vpop.f32.mrb[0].mxu0
      %v1240 = vpop.f32.mrb[0].mxu0
      %1241 = vdwg.mxu0
      %1242 = vst [vmem:[%s327] sm:$0xff] %v1237
      %p1243 = scmp.lt.s32.totalorder %s20, 1
      %s1244 = scalar_select %p1243, %s20, 1
      %s1245 = smul.addr %s1244, 8
      %s1246 = scalar_lea.vmem %s9, %s1245
      // Predicated region
      $region57: #{actor_critic_forward.1} parent=55 // pred_check
        %p1247 = pneg %p232
      $region58: #{actor_critic_forward.1} parent=55 // pred_check_branch
        %1249 = sbr.rel (%p1247) target = $region60
      $region59: #{actor_critic_forward.1} parent=55 // pred_region
        _
      $region60: #{actor_critic_forward.1} parent=55 // pred_fallthru
        _
    $region56: #{actor_critic_forward.1} parent=5 // pred_fallthru
      _
    %p1250 = scmp.le.s32.totalorder 2, %s15
    // Predicated region
    $region61: #{actor_critic_forward.1} parent=5 // pred_check
      %p1251 = pneg %p1250
    $region62: #{actor_critic_forward.1} parent=5 // pred_check_branch
      %1253 = sbr.rel (%p1251) target = $region64
    $region63: #{actor_critic_forward.1} parent=5 // pred_region
      %s1254 = ssub.s32 %s15, 2
      // Predicated region
      $region65: #{actor_critic_forward.1} parent=63 // pred_check
        %p1255 = pneg %p238
      $region66: #{actor_critic_forward.1} parent=63 // pred_check_branch
        %1257 = sbr.rel (%p1255) target = $region68
      $region67: #{actor_critic_forward.1} parent=63 // pred_region
        %p1258 = scmp.lt.s32.totalorder %s21, 1
        %s1259 = scalar_select %p1258, %s21, 1
        %s1260 = smul.addr %s1259, 8
        %s1261 = scalar_lea.vmem %s9, %s1260
      $region68: #{actor_critic_forward.1} parent=63 // pred_fallthru
        _
    $region64: #{actor_critic_forward.1} parent=5 // pred_fallthru
      _
  $region6: #{actor_critic_forward.1} parent=0 // loop_footer
    %s19 = sadd.s32 1, %s15
  $region7: #{actor_critic_forward.1} parent=0 // loop_footer_branch
    %14 = sbr.rel target = $region3
  $region8: #{actor_critic_forward.1} parent=0 // loop_exit
    _

</llo_original>
